<compile_context>
chip_gen: v6e
topology: v6e:2x2x1
jax: 0.10.0
libtpu: 0.0.40
codegen_flags: <defaults>
</compile_context>

<pallas_src>
import jax
import jax.numpy as jnp
from jax import lax
from jax.experimental import pallas as pl
from jax.experimental.pallas import tpu as pltpu

IN_DIM = 32
MEM_DIM = 32
NMAX = 4          # children padded to NMAX; padding points at the zero row
SEQ = 8


# ---------------------------------------------------------------------------
# Pallas kernel: one grid step = one tree node (post-order), fused gates.
# ---------------------------------------------------------------------------
def _tree_kernel(emb_idx_ref, child_ref,              # scalar-prefetch (SMEM)
                 embs_ref, wx_ref, bx_ref, wh_ref, bh_ref,   # VMEM-resident inputs
                 c_state_ref, h_state_ref):                  # VMEM-resident outputs
    k = pl.program_id(0)
    M = MEM_DIM

    # Row 0 of the state buffers is the shared "zero child" used for leaves
    # and padding; initialize it once at the first grid step.
    @pl.when(k == 0)
    def _init():
        c_state_ref[0:1, :] = jnp.zeros((1, M), jnp.float32)
        h_state_ref[0:1, :] = jnp.zeros((1, M), jnp.float32)

    # Gather this node's input embedding and its children's (c, h) rows.
    x = embs_ref[pl.ds(emb_idx_ref[k], 1), :]                      # (1, IN_DIM)
    ch_rows, cc_rows = [], []
    for j in range(NMAX):
        cidx = child_ref[k * NMAX + j]
        ch_rows.append(h_state_ref[pl.ds(cidx, 1), :])
        cc_rows.append(c_state_ref[pl.ds(cidx, 1), :])
    ch = jnp.concatenate(ch_rows, axis=0)                          # (NMAX, M)
    cc = jnp.concatenate(cc_rows, axis=0)                          # (NMAX, M)

    # Fused-gate pre-activations.  Gate order along lanes: [i | o | u | f].
    xs = jnp.dot(x, wx_ref[...], preferred_element_type=jnp.float32) + bx_ref[...]
    chw = jnp.dot(ch, wh_ref[...], preferred_element_type=jnp.float32)   # (NMAX, 4M)
    pre = xs + jnp.sum(chw, axis=0, keepdims=True) + bh_ref[...]          # (1, 4M)
    # (zero-row children contribute 0 to the sum, matching child_h_sum.)

    i = jax.nn.sigmoid(pre[:, 0:M])
    o = jax.nn.sigmoid(pre[:, M:2 * M])
    u = jnp.tanh(pre[:, 2 * M:3 * M])

    # Per-child forget gate: fh(child_h_j) + fx(x); padding children have
    # cc == 0 so their (nonzero) f row contributes nothing to fc.
    f = jax.nn.sigmoid(chw[:, 3 * M:4 * M] + bh_ref[:, 3 * M:4 * M]
                       + xs[:, 3 * M:4 * M])                        # (NMAX, M)
    fc = jnp.sum(f * cc, axis=0, keepdims=True)                     # (1, M)

    c = i * u + fc
    h = o * jnp.tanh(c)

    row = k + 1                         # state row for this node (0 is reserved)
    c_state_ref[pl.ds(row, 1), :] = c
    h_state_ref[pl.ds(row, 1), :] = h


def _tree_lstm_pallas(emb_idx, child_flat, embs2d, wx_f, bx_f, wh_f, bh_f):
    num_nodes = emb_idx.shape[0]
    seq, in_dim = embs2d.shape
    const = lambda n, ei, ci: (0, 0)     # resident block: DMA'd once

    grid_spec = pltpu.PrefetchScalarGridSpec(
        num_scalar_prefetch=2,
        grid=(num_nodes,),
        in_specs=[
            pl.BlockSpec((seq, in_dim), const),                 # embedding table
            pl.BlockSpec((in_dim, 4 * MEM_DIM), const),         # Wx fused
            pl.BlockSpec((1, 4 * MEM_DIM), const),              # bx fused
            pl.BlockSpec((MEM_DIM, 4 * MEM_DIM), const),        # Wh fused
            pl.BlockSpec((1, 4 * MEM_DIM), const),              # bh fused
        ],
        out_specs=(
            pl.BlockSpec((num_nodes + 1, MEM_DIM), const),      # c state (resident)
            pl.BlockSpec((num_nodes + 1, MEM_DIM), const),      # h state (resident)
        ),
    )
    return pl.pallas_call(
        _tree_kernel,
        out_shape=(jax.ShapeDtypeStruct((num_nodes + 1, MEM_DIM), jnp.float32),
                   jax.ShapeDtypeStruct((num_nodes + 1, MEM_DIM), jnp.float32)),
        grid_spec=grid_spec,
        compiler_params=pltpu.CompilerParams(
            dimension_semantics=("arbitrary",)),   # sequential tree dependency
    )(emb_idx, child_flat, embs2d, wx_f, bx_f, wh_f, bh_f)


tree_lstm_pallas = jax.jit(_tree_lstm_pallas)


# ---------------------------------------------------------------------------
# Parameters (deterministic init, matching nn.Linear default uniform bounds)
# ---------------------------------------------------------------------------
def init_params(key):
    ks = jax.random.split(key, 16)

    def linear(kw, kb, fan_in, fan_out):
        bound = 1.0 / float(fan_in) ** 0.5
        w = jax.random.uniform(kw, (fan_in, fan_out), jnp.float32, -bound, bound)
        b = jax.random.uniform(kb, (1, fan_out), jnp.float32, -bound, bound)
        return w, b

    wx_l, bx_l, wh_l, bh_l = [], [], [], []
    for g in range(4):                       # gate order: i, o, u, f
        w, b = linear(ks[4 * g + 0], ks[4 * g + 1], IN_DIM, MEM_DIM)
        wx_l.append(w); bx_l.append(b)
        w, b = linear(ks[4 * g + 2], ks[4 * g + 3], MEM_DIM, MEM_DIM)
        wh_l.append(w); bh_l.append(b)
    return (jnp.stack(wx_l), jnp.stack(bx_l), jnp.stack(wh_l), jnp.stack(bh_l))


def fuse_params(wx, bx, wh, bh):
    """Stacked per-gate (4, fan_in, M) -> lane-fused (fan_in, 4*M)."""
    wx_f = jnp.transpose(wx, (1, 0, 2)).reshape(IN_DIM, 4 * MEM_DIM)
    wh_f = jnp.transpose(wh, (1, 0, 2)).reshape(MEM_DIM, 4 * MEM_DIM)
    bx_f = bx.reshape(1, 4 * MEM_DIM)
    bh_f = bh.reshape(1, 4 * MEM_DIM)
    return wx_f, bx_f, wh_f, bh_f


# ---------------------------------------------------------------------------
# Host-side schedule construction (replaces per-node recursion at runtime)
# ---------------------------------------------------------------------------
class Tree:
    def __init__(self, idx, children=()):
        self.idx = idx
        self.children = list(children)


def build_schedule(tree, nmax=NMAX):
    """Post-order schedule: per node the embedding index and padded child ids.
    Child id 0 refers to the reserved zero-state row (leaf / padding)."""
    emb_idx, child_idx = [], []

    def visit(t):
        ids = [visit(c) for c in t.children]
        assert len(ids) <= nmax, "node has more children than NMAX"
        emb_idx.append(t.idx - 1)
        child_idx.append(ids + [0] * (nmax - len(ids)))
        return len(emb_idx)              # 1-based row id in the state buffer

    root_id = visit(tree)
    child_flat = [c for row in child_idx for c in row]
    return (jnp.asarray(emb_idx, dtype=jnp.int32),
            jnp.asarray(child_flat, dtype=jnp.int32),
            root_id)


# ---------------------------------------------------------------------------
# Pure-JAX reference (recursive, unfused) for the correctness check
# ---------------------------------------------------------------------------
def _gather_children_ref(states):
    if states:
        child_c = jnp.concatenate([s[0] for s in states], axis=0)
        child_h = jnp.concatenate([s[1] for s in states], axis=0)
        n = len(states)
    else:  # leaf: one zero child, as in get_child_states
        child_c = jnp.zeros((1, MEM_DIM), jnp.float32)
        child_h = jnp.zeros((1, MEM_DIM), jnp.float32)
        n = 1
    pad = NMAX - child_c.shape[0]
    child_c = jnp.pad(child_c, ((0, pad), (0, 0)))
    child_h = jnp.pad(child_h, ((0, pad), (0, 0)))
    return n, child_c, child_h


def node_forward_ref(n, x, child_c, child_h, wx, bx, wh, bh):
    mask = (jnp.arange(NMAX)[:, None] < n).astype(jnp.float32)
    ch = child_h * mask
    cc = child_c * mask
    h_sum = ch.sum(0, keepdims=True)
    i = jax.nn.sigmoid(x @ wx[0] + bx[0] + h_sum @ wh[0] + bh[0])
    o = jax.nn.sigmoid(x @ wx[1] + bx[1] + h_sum @ wh[1] + bh[1])
    u = jnp.tanh(x @ wx[2] + bx[2] + h_sum @ wh[2] + bh[2])
    f = jax.nn.sigmoid(ch @ wh[3] + bh[3] + x @ wx[3] + bx[3])
    fc = (f * cc).sum(0, keepdims=True)
    c = i * u + fc
    h = o * jnp.tanh(c)
    return c, h


def tree_forward_ref(tree, embs2d, params):
    states = [tree_forward_ref(c, embs2d, params) for c in tree.children]
    n, child_c, child_h = _gather_children_ref(states)
    x = embs2d[tree.idx - 1][None, :]
    return node_forward_ref(n, x, child_c, child_h, *params)


# ---------------------------------------------------------------------------
if __name__ == "__main__":
    key = jax.random.PRNGKey(0)
    kp, ke = jax.random.split(key)
    params = init_params(kp)                              # stacked per-gate
    wx_f, bx_f, wh_f, bh_f = fuse_params(*params)         # lane-fused for the kernel
    embs = jax.random.normal(ke, (SEQ, 1, IN_DIM), jnp.float32)
    embs2d = embs.reshape(SEQ, IN_DIM)

    # small tree: root(idx=5) -> [ node(idx=2) -> [leaf(1), leaf(3)], leaf(4) ]
    tree = Tree(5, [Tree(2, [Tree(1), Tree(3)]), Tree(4)])
    emb_idx, child_flat, root_id = build_schedule(tree)

    c_state, h_state = tree_lstm_pallas(emb_idx, child_flat, embs2d,
                                        wx_f, bx_f, wh_f, bh_f)
    c_state = jax.block_until_ready(c_state)
    h_state = jax.block_until_ready(h_state)
    c = c_state[root_id:root_id + 1]
    h = h_state[root_id:root_id + 1]

    c_ref, h_ref = tree_forward_ref(tree, embs2d, params)
    assert c.shape == (1, MEM_DIM) and h.shape == (1, MEM_DIM)
    assert jnp.allclose(c, c_ref, atol=1e-5), "c mismatch vs reference"
    assert jnp.allclose(h, h_ref, atol=1e-5), "h mismatch vs reference"

    print("KERNEL_OK")
</pallas_src>

<mosaic_0001>
module attributes {stable_mosaic.version = 11 : i64} {
  func.func @_tree_kernel(%arg0: i32, %arg1: memref<5xi32, #tpu.memory_space<smem>>, %arg2: memref<20xi32, #tpu.memory_space<smem>>, %arg3: memref<8x32xf32, #tpu.memory_space<vmem>>, %arg4: memref<32x128xf32, #tpu.memory_space<vmem>>, %arg5: memref<1x128xf32, #tpu.memory_space<vmem>>, %arg6: memref<32x128xf32, #tpu.memory_space<vmem>>, %arg7: memref<1x128xf32, #tpu.memory_space<vmem>>, %arg8: memref<6x32xf32, #tpu.memory_space<vmem>>, %arg9: memref<6x32xf32, #tpu.memory_space<vmem>>) attributes {dimension_semantics = [#tpu.dimension_semantics<arbitrary>], iteration_bounds = array<i64: 5>, scalar_prefetch = 2 : i64, scratch_operands = 0 : i64, tpu.core_type = #tpu.core_type<tc>, window_params = [{pipeline_mode = #tpu.pipeline_mode<synchronous>, transform_indices = @transform_0, window_bounds = array<i64: 8, 32>}, {pipeline_mode = #tpu.pipeline_mode<synchronous>, transform_indices = @transform_1, window_bounds = array<i64: 32, 128>}, {pipeline_mode = #tpu.pipeline_mode<synchronous>, transform_indices = @transform_2, window_bounds = array<i64: 1, 128>}, {pipeline_mode = #tpu.pipeline_mode<synchronous>, transform_indices = @transform_3, window_bounds = array<i64: 32, 128>}, {pipeline_mode = #tpu.pipeline_mode<synchronous>, transform_indices = @transform_4, window_bounds = array<i64: 1, 128>}, {pipeline_mode = #tpu.pipeline_mode<synchronous>, transform_indices = @transform_5, window_bounds = array<i64: 6, 32>}, {pipeline_mode = #tpu.pipeline_mode<synchronous>, transform_indices = @transform_6, window_bounds = array<i64: 6, 32>}]} {
    %c0_i32 = arith.constant 0 : i32
    %0 = arith.cmpi eq, %arg0, %c0_i32 : i32
    %1 = arith.extui %0 : i1 to i32
    %c0_i32_0 = arith.constant 0 : i32
    %2 = arith.cmpi ne, %1, %c0_i32_0 : i32
    scf.if %2 {
      %cst_31 = arith.constant 0.000000e+00 : f32
      %90 = vector.broadcast %cst_31 : f32 to vector<1x32xf32>
      %c0_32 = arith.constant 0 : index
      %c0_33 = arith.constant 0 : index
      %91 = vector.load %arg8[%c0_32, %c0_33] : memref<6x32xf32, #tpu.memory_space<vmem>>, vector<1x32xf32>
      tpu.vector_store %arg8[%c0_32, %c0_33], %90 {strides = array<i32>} : memref<6x32xf32, #tpu.memory_space<vmem>>, vector<1x32xf32>,
      %cst_34 = arith.constant 0.000000e+00 : f32
      %92 = vector.broadcast %cst_34 : f32 to vector<1x32xf32>
      %c0_35 = arith.constant 0 : index
      %c0_36 = arith.constant 0 : index
      %93 = vector.load %arg9[%c0_35, %c0_36] : memref<6x32xf32, #tpu.memory_space<vmem>>, vector<1x32xf32>
      tpu.vector_store %arg9[%c0_35, %c0_36], %92 {strides = array<i32>} : memref<6x32xf32, #tpu.memory_space<vmem>>, vector<1x32xf32>,
    } else {
    }
    %3 = arith.index_cast %arg0 : i32 to index
    %4 = memref.load %arg1[%3] : memref<5xi32, #tpu.memory_space<smem>>
    %5 = arith.index_cast %4 : i32 to index
    %c0 = arith.constant 0 : index
    %6 = vector.load %arg3[%5, %c0] : memref<8x32xf32, #tpu.memory_space<vmem>>, vector<1x32xf32>
    %c4_i32 = arith.constant 4 : i32
    %7 = arith.muli %arg0, %c4_i32 : i32
    %c0_i32_1 = arith.constant 0 : i32
    %8 = arith.addi %7, %c0_i32_1 : i32
    %9 = arith.index_cast %8 : i32 to index
    %10 = memref.load %arg2[%9] : memref<20xi32, #tpu.memory_space<smem>>
    %11 = arith.index_cast %10 : i32 to index
    %c0_2 = arith.constant 0 : index
    %12 = vector.load %arg9[%11, %c0_2] : memref<6x32xf32, #tpu.memory_space<vmem>>, vector<1x32xf32>
    %13 = arith.index_cast %10 : i32 to index
    %c0_3 = arith.constant 0 : index
    %14 = vector.load %arg8[%13, %c0_3] : memref<6x32xf32, #tpu.memory_space<vmem>>, vector<1x32xf32>
    %c4_i32_4 = arith.constant 4 : i32
    %15 = arith.muli %arg0, %c4_i32_4 : i32
    %c1_i32 = arith.constant 1 : i32
    %16 = arith.addi %15, %c1_i32 : i32
    %17 = arith.index_cast %16 : i32 to index
    %18 = memref.load %arg2[%17] : memref<20xi32, #tpu.memory_space<smem>>
    %19 = arith.index_cast %18 : i32 to index
    %c0_5 = arith.constant 0 : index
    %20 = vector.load %arg9[%19, %c0_5] : memref<6x32xf32, #tpu.memory_space<vmem>>, vector<1x32xf32>
    %21 = arith.index_cast %18 : i32 to index
    %c0_6 = arith.constant 0 : index
    %22 = vector.load %arg8[%21, %c0_6] : memref<6x32xf32, #tpu.memory_space<vmem>>, vector<1x32xf32>
    %c4_i32_7 = arith.constant 4 : i32
    %23 = arith.muli %arg0, %c4_i32_7 : i32
    %c2_i32 = arith.constant 2 : i32
    %24 = arith.addi %23, %c2_i32 : i32
    %25 = arith.index_cast %24 : i32 to index
    %26 = memref.load %arg2[%25] : memref<20xi32, #tpu.memory_space<smem>>
    %27 = arith.index_cast %26 : i32 to index
    %c0_8 = arith.constant 0 : index
    %28 = vector.load %arg9[%27, %c0_8] : memref<6x32xf32, #tpu.memory_space<vmem>>, vector<1x32xf32>
    %29 = arith.index_cast %26 : i32 to index
    %c0_9 = arith.constant 0 : index
    %30 = vector.load %arg8[%29, %c0_9] : memref<6x32xf32, #tpu.memory_space<vmem>>, vector<1x32xf32>
    %c4_i32_10 = arith.constant 4 : i32
    %31 = arith.muli %arg0, %c4_i32_10 : i32
    %c3_i32 = arith.constant 3 : i32
    %32 = arith.addi %31, %c3_i32 : i32
    %33 = arith.index_cast %32 : i32 to index
    %34 = memref.load %arg2[%33] : memref<20xi32, #tpu.memory_space<smem>>
    %35 = arith.index_cast %34 : i32 to index
    %c0_11 = arith.constant 0 : index
    %36 = vector.load %arg9[%35, %c0_11] : memref<6x32xf32, #tpu.memory_space<vmem>>, vector<1x32xf32>
    %37 = arith.index_cast %34 : i32 to index
    %c0_12 = arith.constant 0 : index
    %38 = vector.load %arg8[%37, %c0_12] : memref<6x32xf32, #tpu.memory_space<vmem>>, vector<1x32xf32>
    %39 = tpu.concatenate %12, %20, %28, %36 in 0 : vector<1x32xf32>, vector<1x32xf32>, vector<1x32xf32>, vector<1x32xf32> -> vector<4x32xf32>
    %40 = tpu.concatenate %14, %22, %30, %38 in 0 : vector<1x32xf32>, vector<1x32xf32>, vector<1x32xf32>, vector<1x32xf32> -> vector<4x32xf32>
    %c0_13 = arith.constant 0 : index
    %c0_14 = arith.constant 0 : index
    %41 = vector.load %arg4[%c0_13, %c0_14] : memref<32x128xf32, #tpu.memory_space<vmem>>, vector<32x128xf32>
    %cst = arith.constant dense<0.000000e+00> : vector<1x128xf32>
    %42 = tpu.matmul %6, %41, %cst {dimension_numbers = #tpu.dot_dimension_numbers<[1], [0], [0], [1], [0, 0, 1, 1], [], []>} : vector<1x32xf32>, vector<32x128xf32>, vector<1x128xf32> -> vector<1x128xf32>
    %c0_15 = arith.constant 0 : index
    %c0_16 = arith.constant 0 : index
    %43 = vector.load %arg5[%c0_15, %c0_16] : memref<1x128xf32, #tpu.memory_space<vmem>>, vector<1x128xf32>
    %44 = arith.addf %42, %43 : vector<1x128xf32>
    %c0_17 = arith.constant 0 : index
    %c0_18 = arith.constant 0 : index
    %45 = vector.load %arg6[%c0_17, %c0_18] : memref<32x128xf32, #tpu.memory_space<vmem>>, vector<32x128xf32>
    %cst_19 = arith.constant dense<0.000000e+00> : vector<4x128xf32>
    %46 = tpu.matmul %39, %45, %cst_19 {dimension_numbers = #tpu.dot_dimension_numbers<[1], [0], [0], [1], [0, 0, 1, 1], [], []>} : vector<4x32xf32>, vector<32x128xf32>, vector<4x128xf32> -> vector<4x128xf32>
    %cst_20 = arith.constant dense<0.000000e+00> : vector<128xf32>
    %47 = vector.multi_reduction <add>, %46, %cst_20 [0] : vector<4x128xf32> to vector<128xf32>
    %48 = vector.shape_cast %47 : vector<128xf32> to vector<1x128xf32>
    %49 = arith.addf %44, %48 : vector<1x128xf32>
    %c0_21 = arith.constant 0 : index
    %c0_22 = arith.constant 0 : index
    %50 = vector.load %arg7[%c0_21, %c0_22] : memref<1x128xf32, #tpu.memory_space<vmem>>, vector<1x128xf32>
    %51 = arith.addf %49, %50 : vector<1x128xf32>
    %52 = vector.extract_strided_slice %51 {offsets = [0, 0], sizes = [1, 32], strides = [1, 1]} : vector<1x128xf32> to vector<1x32xf32>
    %53 = arith.negf %52 : vector<1x32xf32>
    %54 = math.exp %53 : vector<1x32xf32>
    %cst_23 = arith.constant 1.000000e+00 : f32
    %55 = vector.broadcast %cst_23 : f32 to vector<1x32xf32>
    %56 = arith.addf %55, %54 : vector<1x32xf32>
    %57 = arith.divf %55, %56 : vector<1x32xf32>
    %58 = vector.extract_strided_slice %51 {offsets = [0, 32], sizes = [1, 32], strides = [1, 1]} : vector<1x128xf32> to vector<1x32xf32>
    %59 = arith.negf %58 : vector<1x32xf32>
    %60 = math.exp %59 : vector<1x32xf32>
    %cst_24 = arith.constant 1.000000e+00 : f32
    %61 = vector.broadcast %cst_24 : f32 to vector<1x32xf32>
    %62 = arith.addf %61, %60 : vector<1x32xf32>
    %63 = arith.divf %61, %62 : vector<1x32xf32>
    %64 = vector.extract_strided_slice %51 {offsets = [0, 64], sizes = [1, 32], strides = [1, 1]} : vector<1x128xf32> to vector<1x32xf32>
    %65 = math.tanh %64 : vector<1x32xf32>
    %66 = vector.extract_strided_slice %46 {offsets = [0, 96], sizes = [4, 32], strides = [1, 1]} : vector<4x128xf32> to vector<4x32xf32>
    %c0_25 = arith.constant 0 : index
    %c96 = arith.constant 96 : index
    %67 = vector.load %arg7[%c0_25, %c96] : memref<1x128xf32, #tpu.memory_space<vmem>>, vector<1x32xf32>
    %68 = vector.broadcast %67 : vector<1x32xf32> to vector<4x32xf32>
    %69 = arith.addf %66, %68 : vector<4x32xf32>
    %70 = vector.extract_strided_slice %44 {offsets = [0, 96], sizes = [1, 32], strides = [1, 1]} : vector<1x128xf32> to vector<1x32xf32>
    %71 = vector.broadcast %70 : vector<1x32xf32> to vector<4x32xf32>
    %72 = arith.addf %69, %71 : vector<4x32xf32>
    %73 = arith.negf %72 : vector<4x32xf32>
    %74 = math.exp %73 : vector<4x32xf32>
    %cst_26 = arith.constant 1.000000e+00 : f32
    %75 = vector.broadcast %cst_26 : f32 to vector<4x32xf32>
    %76 = arith.addf %75, %74 : vector<4x32xf32>
    %77 = arith.divf %75, %76 : vector<4x32xf32>
    %78 = arith.mulf %77, %40 : vector<4x32xf32>
    %cst_27 = arith.constant dense<0.000000e+00> : vector<32xf32>
    %79 = vector.multi_reduction <add>, %78, %cst_27 [0] : vector<4x32xf32> to vector<32xf32>
    %80 = vector.shape_cast %79 : vector<32xf32> to vector<1x32xf32>
    %81 = arith.mulf %57, %65 : vector<1x32xf32>
    %82 = arith.addf %81, %80 : vector<1x32xf32>
    %83 = math.tanh %82 : vector<1x32xf32>
    %84 = arith.mulf %63, %83 : vector<1x32xf32>
    %c1_i32_28 = arith.constant 1 : i32
    %85 = arith.addi %arg0, %c1_i32_28 : i32
    %86 = arith.index_cast %85 : i32 to index
    %c0_29 = arith.constant 0 : index
    %87 = vector.load %arg8[%86, %c0_29] : memref<6x32xf32, #tpu.memory_space<vmem>>, vector<1x32xf32>
    tpu.vector_store %arg8[%86, %c0_29], %82 {strides = array<i32>} : memref<6x32xf32, #tpu.memory_space<vmem>>, vector<1x32xf32>,
    %88 = arith.index_cast %85 : i32 to index
    %c0_30 = arith.constant 0 : index
    %89 = vector.load %arg9[%88, %c0_30] : memref<6x32xf32, #tpu.memory_space<vmem>>, vector<1x32xf32>
    tpu.vector_store %arg9[%88, %c0_30], %84 {strides = array<i32>} : memref<6x32xf32, #tpu.memory_space<vmem>>, vector<1x32xf32>,
    return
  }
  func.func @transform_0(%arg0: i32, %arg1: memref<5xi32, #tpu.memory_space<smem>>, %arg2: memref<20xi32, #tpu.memory_space<smem>>) -> (i32, i32) {
    %c0_i32 = arith.constant 0 : i32
    %c0_i32_0 = arith.constant 0 : i32
    %c0_i32_1 = arith.constant 0 : i32
    return %c0_i32, %c0_i32_0 : i32, i32
  }
  func.func @transform_1(%arg0: i32, %arg1: memref<5xi32, #tpu.memory_space<smem>>, %arg2: memref<20xi32, #tpu.memory_space<smem>>) -> (i32, i32) {
    %c0_i32 = arith.constant 0 : i32
    %c0_i32_0 = arith.constant 0 : i32
    %c0_i32_1 = arith.constant 0 : i32
    return %c0_i32, %c0_i32_0 : i32, i32
  }
  func.func @transform_2(%arg0: i32, %arg1: memref<5xi32, #tpu.memory_space<smem>>, %arg2: memref<20xi32, #tpu.memory_space<smem>>) -> (i32, i32) {
    %c0_i32 = arith.constant 0 : i32
    %c0_i32_0 = arith.constant 0 : i32
    %c0_i32_1 = arith.constant 0 : i32
    return %c0_i32, %c0_i32_0 : i32, i32
  }
  func.func @transform_3(%arg0: i32, %arg1: memref<5xi32, #tpu.memory_space<smem>>, %arg2: memref<20xi32, #tpu.memory_space<smem>>) -> (i32, i32) {
    %c0_i32 = arith.constant 0 : i32
    %c0_i32_0 = arith.constant 0 : i32
    %c0_i32_1 = arith.constant 0 : i32
    return %c0_i32, %c0_i32_0 : i32, i32
  }
  func.func @transform_4(%arg0: i32, %arg1: memref<5xi32, #tpu.memory_space<smem>>, %arg2: memref<20xi32, #tpu.memory_space<smem>>) -> (i32, i32) {
    %c0_i32 = arith.constant 0 : i32
    %c0_i32_0 = arith.constant 0 : i32
    %c0_i32_1 = arith.constant 0 : i32
    return %c0_i32, %c0_i32_0 : i32, i32
  }
  func.func @transform_5(%arg0: i32, %arg1: memref<5xi32, #tpu.memory_space<smem>>, %arg2: memref<20xi32, #tpu.memory_space<smem>>) -> (i32, i32) {
    %c0_i32 = arith.constant 0 : i32
    %c0_i32_0 = arith.constant 0 : i32
    %c0_i32_1 = arith.constant 0 : i32
    return %c0_i32, %c0_i32_0 : i32, i32
  }
  func.func @transform_6(%arg0: i32, %arg1: memref<5xi32, #tpu.memory_space<smem>>, %arg2: memref<20xi32, #tpu.memory_space<smem>>) -> (i32, i32) {
    %c0_i32 = arith.constant 0 : i32
    %c0_i32_0 = arith.constant 0 : i32
    %c0_i32_1 = arith.constant 0 : i32
    return %c0_i32, %c0_i32_0 : i32, i32
  }
}

</mosaic_0001>

<llo_original>
// kernel: _tree_lstm_pallas.1
$region0: #{_tree_lstm_pallas.1}
  #allocation0 [shape = 'u32[]', space=smem, size = 0x4, offset = 0x4, fixed_abs, tag = 'smem constant byte address 0x4 - core index']
  #allocation1 [shape = 'u32[144,128]{1,0:T(1,128)}', space=vmem, size = 0x12000, scoped, tag = 'internal scratch']
  #allocation2 [shape = 's32[1]{0}', space=sflag, size = 0x4, scoped, tag = 'scoped memory for _tree_lstm_pallas.1']
  #allocation3 [shape = 'u8[512]{0}', space=smem, size = 0x200, scoped, tag = 'prefetched SMEM operand 0']
  #allocation4 [shape = 'u8[512]{0}', space=smem, size = 0x200, scoped, tag = 'prefetched SMEM operand 1']
  %s0 = inlined_call_operand.hbm [shape: s32[5], index: 0, kind: input, shape index: {}]
  %s1 = inlined_call_operand.vmem [shape: s32[20], index: 1, kind: input, shape index: {}]
  %s2 = inlined_call_operand.hbm [shape: f32[8,32], index: 2, kind: input, shape index: {}]
  %s3 = inlined_call_operand.hbm [shape: f32[32,128], index: 3, kind: input, shape index: {}]
  %s4 = inlined_call_operand.vmem [shape: f32[1,128], index: 4, kind: input, shape index: {}]
  %s5 = inlined_call_operand.hbm [shape: f32[32,128], index: 5, kind: input, shape index: {}]
  %s6 = inlined_call_operand.vmem [shape: f32[1,128], index: 6, kind: input, shape index: {}]
  %s7 = inlined_call_operand.hbm [shape: f32[6,32], index: 7, kind: output, shape index: {0}]
  %s8 = inlined_call_operand.hbm [shape: f32[6,32], index: 8, kind: output, shape index: {1}]
  %9 = xla_tuple %s7, %s8
  %s10 = sld [smem:[#allocation0]]
  $region77: #{_tree_lstm_pallas.1} parent=0
    _
  %s12 = ssub.s32 1, %s10
  %s13 = scalar_select 0, %s12, %s10
  %15 = dma.hbm_to_smem %s0, 16, [#allocation3], [#allocation2]
  %s16 = sshll.u32 %s1, 4
  %s17 = int_to_ptr.vmem [resolvable:$true] %s16
  %19 = dma.vmem_to_smem %s17, 16, [#allocation4], [#allocation2]
  %20 = dma.done [#allocation2], 32
  %21 = sfence
  $region1: #{_tree_lstm_pallas.1} parent=0
    #allocation5 [shape = 'u8[4096]{0}', space=vmem, size = 0x1000, scoped, tag = 'input window, operand 2, single buffered']
    #allocation6 [shape = 's32[2]{0}', space=sflag, size = 0x8, scoped, tag = 'scoped memory for _tree_lstm_pallas.1']
    #allocation7 [shape = 's32[2]{0}', space=sflag, size = 0x8, scoped, tag = 'scoped memory for _tree_lstm_pallas.1']
    #allocation8 [shape = 'u8[16384]{0}', space=vmem, size = 0x4000, scoped, tag = 'input window, operand 3, single buffered']
    #allocation9 [shape = 's32[1]{0}', space=sflag, size = 0x4, scoped, tag = 'scoped memory for _tree_lstm_pallas.1']
    #allocation10 [shape = 'u8[16384]{0}', space=vmem, size = 0x4000, scoped, tag = 'input window, operand 5, single buffered']
    #allocation11 [shape = 'u8[4096]{0}', space=vmem, size = 0x1000, scoped, tag = 'output window, operand 0, single buffered']
    #allocation12 [shape = 'u8[4096]{0}', space=vmem, size = 0x1000, scoped, tag = 'output window, operand 1, single buffered']
    #allocation13 [shape = 's32[1]{0}', space=sflag, size = 0x4, scoped, tag = 'scoped memory for _tree_lstm_pallas.1']
    %22 = vsyncpa [#allocation6], 0
    %23 = vsyncpa [#allocation9], 0
    %24 = vsyncpa [#allocation7], 0
    %25 = vsyncpa [#allocation13], 0
    loop: start=0, step=1, limit=7
    $region2: #{_tree_lstm_pallas.1} parent=1 // loop_pre_header
      _
    $region3: #{_tree_lstm_pallas.1} parent=1 // loop_header
      %s27 = sphi 0, %s31
      %p28 = scmp.ge.s32.totalorder %s27, 7
      %s35 = sphi 0, %s35
      %s37 = sphi 0, %s35
      %s38 = sphi 0, %s37
      %s52 = sphi 0, %s38
      %s56 = sphi 0, %s56
      %s58 = sphi 0, %s56
      %s59 = sphi 0, %s58
      %s73 = sphi 0, %s59
      %s77 = sphi 0, %s77
      %s79 = sphi 0, %s77
      %s80 = sphi 0, %s79
      %s94 = sphi 0, %s80
      %s98 = sphi 0, %s98
      %s100 = sphi 0, %s98
      %s101 = sphi 0, %s100
      %s115 = sphi 0, %s101
      %s119 = sphi 0, %s119
      %s121 = sphi 0, %s119
      %s122 = sphi 0, %s121
      %s136 = sphi 0, %s122
      %s140 = sphi 0, %s140
      %s142 = sphi 0, %s140
      %s143 = sphi 0, %s142
      %s157 = sphi 0, %s143
      %s161 = sphi 0, %s161
      %s163 = sphi 0, %s161
      %s164 = sphi 0, %s163
      %s178 = sphi 0, %s164
    $region4: #{_tree_lstm_pallas.1} parent=1 // loop_header_branch
      %30 = sbr.rel (%p28) target = $region8
    $region5: #{_tree_lstm_pallas.1} parent=1 // loop_body
      %s32 = ssub.s32 %s27, 1
      %s33 = ssub.s32 %s27, 2
      %s34 = sadd.s32 %s27, 1
      %s36 = sadd.s32 %s35, 1
      %p39 = scmp.eq.s32.totalorder %s27, 4
      %p40 = scmp.ne.s32.totalorder %s35, %s37
      %p41 = scmp.eq.s32.totalorder %s27, 0
      %p42 = por %p40, %p41
      %p43 = scmp.ne.s32.totalorder %s35, %s37
      %p44 = scmp.eq.s32.totalorder %s32, 4
      %p45 = por %p43, %p44
      %p46 = scmp.ne.s32.totalorder %s37, %s38
      %p47 = scmp.eq.s32.totalorder %s32, 0
      %p48 = por %p46, %p47
      %p49 = scmp.ne.s32.totalorder %s37, %s38
      %p50 = scmp.eq.s32.totalorder %s33, 4
      %p51 = por %p49, %p50
      %p53 = scmp.ne.s32.totalorder %s38, %s52
      %p54 = scmp.eq.s32.totalorder %s33, 0
      %p55 = por %p53, %p54
      %s57 = sadd.s32 %s56, 1
      %p60 = scmp.eq.s32.totalorder %s27, 4
      %p61 = scmp.ne.s32.totalorder %s56, %s58
      %p62 = scmp.eq.s32.totalorder %s27, 0
      %p63 = por %p61, %p62
      %p64 = scmp.ne.s32.totalorder %s56, %s58
      %p65 = scmp.eq.s32.totalorder %s32, 4
      %p66 = por %p64, %p65
      %p67 = scmp.ne.s32.totalorder %s58, %s59
      %p68 = scmp.eq.s32.totalorder %s32, 0
      %p69 = por %p67, %p68
      %p70 = scmp.ne.s32.totalorder %s58, %s59
      %p71 = scmp.eq.s32.totalorder %s33, 4
      %p72 = por %p70, %p71
      %p74 = scmp.ne.s32.totalorder %s59, %s73
      %p75 = scmp.eq.s32.totalorder %s33, 0
      %p76 = por %p74, %p75
      %s78 = sadd.s32 %s77, 1
      %p81 = scmp.eq.s32.totalorder %s27, 4
      %p82 = scmp.ne.s32.totalorder %s77, %s79
      %p83 = scmp.eq.s32.totalorder %s27, 0
      %p84 = por %p82, %p83
      %p85 = scmp.ne.s32.totalorder %s77, %s79
      %p86 = scmp.eq.s32.totalorder %s32, 4
      %p87 = por %p85, %p86
      %p88 = scmp.ne.s32.totalorder %s79, %s80
      %p89 = scmp.eq.s32.totalorder %s32, 0
      %p90 = por %p88, %p89
      %p91 = scmp.ne.s32.totalorder %s79, %s80
      %p92 = scmp.eq.s32.totalorder %s33, 4
      %p93 = por %p91, %p92
      %p95 = scmp.ne.s32.totalorder %s80, %s94
      %p96 = scmp.eq.s32.totalorder %s33, 0
      %p97 = por %p95, %p96
      %s99 = sadd.s32 %s98, 1
      %p102 = scmp.eq.s32.totalorder %s27, 4
      %p103 = scmp.ne.s32.totalorder %s98, %s100
      %p104 = scmp.eq.s32.totalorder %s27, 0
      %p105 = por %p103, %p104
      %p106 = scmp.ne.s32.totalorder %s98, %s100
      %p107 = scmp.eq.s32.totalorder %s32, 4
      %p108 = por %p106, %p107
      %p109 = scmp.ne.s32.totalorder %s100, %s101
      %p110 = scmp.eq.s32.totalorder %s32, 0
      %p111 = por %p109, %p110
      %p112 = scmp.ne.s32.totalorder %s100, %s101
      %p113 = scmp.eq.s32.totalorder %s33, 4
      %p114 = por %p112, %p113
      %p116 = scmp.ne.s32.totalorder %s101, %s115
      %p117 = scmp.eq.s32.totalorder %s33, 0
      %p118 = por %p116, %p117
      %s120 = sadd.s32 %s119, 1
      %p123 = scmp.eq.s32.totalorder %s27, 4
      %p124 = scmp.ne.s32.totalorder %s119, %s121
      %p125 = scmp.eq.s32.totalorder %s27, 0
      %p126 = por %p124, %p125
      %p127 = scmp.ne.s32.totalorder %s119, %s121
      %p128 = scmp.eq.s32.totalorder %s32, 4
      %p129 = por %p127, %p128
      %p130 = scmp.ne.s32.totalorder %s121, %s122
      %p131 = scmp.eq.s32.totalorder %s32, 0
      %p132 = por %p130, %p131
      %p133 = scmp.ne.s32.totalorder %s121, %s122
      %p134 = scmp.eq.s32.totalorder %s33, 4
      %p135 = por %p133, %p134
      %p137 = scmp.ne.s32.totalorder %s122, %s136
      %p138 = scmp.eq.s32.totalorder %s33, 0
      %p139 = por %p137, %p138
      %s141 = sadd.s32 %s140, 1
      %p144 = scmp.eq.s32.totalorder %s27, 4
      %p145 = scmp.ne.s32.totalorder %s140, %s142
      %p146 = scmp.eq.s32.totalorder %s27, 0
      %p147 = por %p145, %p146
      %p148 = scmp.ne.s32.totalorder %s140, %s142
      %p149 = scmp.eq.s32.totalorder %s32, 4
      %p150 = por %p148, %p149
      %p151 = scmp.ne.s32.totalorder %s142, %s143
      %p152 = scmp.eq.s32.totalorder %s32, 0
      %p153 = por %p151, %p152
      %p154 = scmp.ne.s32.totalorder %s142, %s143
      %p155 = scmp.eq.s32.totalorder %s33, 4
      %p156 = por %p154, %p155
      %p158 = scmp.ne.s32.totalorder %s143, %s157
      %p159 = scmp.eq.s32.totalorder %s33, 0
      %p160 = por %p158, %p159
      %s162 = sadd.s32 %s161, 1
      %p165 = scmp.eq.s32.totalorder %s27, 4
      %p166 = scmp.ne.s32.totalorder %s161, %s163
      %p167 = scmp.eq.s32.totalorder %s27, 0
      %p168 = por %p166, %p167
      %p169 = scmp.ne.s32.totalorder %s161, %s163
      %p170 = scmp.eq.s32.totalorder %s32, 4
      %p171 = por %p169, %p170
      %p172 = scmp.ne.s32.totalorder %s163, %s164
      %p173 = scmp.eq.s32.totalorder %s32, 0
      %p174 = por %p172, %p173
      %p175 = scmp.ne.s32.totalorder %s163, %s164
      %p176 = scmp.eq.s32.totalorder %s33, 4
      %p177 = por %p175, %p176
      %p179 = scmp.ne.s32.totalorder %s164, %s178
      %p180 = scmp.eq.s32.totalorder %s33, 0
      %p181 = por %p179, %p180
      %p182 = scmp.le.s32.totalorder 1, %s27
      %p183 = scmp.lt.s32.totalorder %s27, 6
      %p184 = pnand %p182, %p183
      %p185 = pneg %p184
      // Predicated region
      $region9: #{_tree_lstm_pallas.1} parent=5 // pred_check
        _
      $region10: #{_tree_lstm_pallas.1} parent=5 // pred_check_branch
        %187 = sbr.rel (%p184) target = $region12
      $region11: #{_tree_lstm_pallas.1} parent=5 // pred_region
        %s188 = ssub.s32 %s27, 1
        // Predicated region
        $region13: #{_tree_lstm_pallas.1} parent=11 // pred_check
          %p189 = pneg %p48
        $region14: #{_tree_lstm_pallas.1} parent=11 // pred_check_branch
          %191 = sbr.rel (%p189) target = $region16
        $region15: #{_tree_lstm_pallas.1} parent=11 // pred_region
          %s193 = ssub.s32 128, 128
          %194 = vsyncadd [#allocation6], %s193
          %s196 = sshll.u32 [#allocation5], 4
          %s197 = int_to_ptr.vmem [resolvable:$true] %s196
          %199 = dma.hbm_to_vmem [thread:$0]  %s2, 128, %s197, [#allocation6]
        $region16: #{_tree_lstm_pallas.1} parent=11 // pred_fallthru
          _
        // Predicated region
        $region17: #{_tree_lstm_pallas.1} parent=11 // pred_check
          %p200 = pneg %p69
        $region18: #{_tree_lstm_pallas.1} parent=11 // pred_check_branch
          %202 = sbr.rel (%p200) target = $region20
        $region19: #{_tree_lstm_pallas.1} parent=11 // pred_region
          %s204 = ssub.s32 512, 512
          %205 = vsyncadd [#allocation9], %s204
          %s206 = sshll.u32 [#allocation8], 4
          %s207 = int_to_ptr.vmem [resolvable:$true] %s206
          %212 = dma.hbm_to_vmem [thread:$0]  %s3, 512, %s207, [#allocation9], 128, 128, 8
        $region20: #{_tree_lstm_pallas.1} parent=11 // pred_fallthru
          _
        // Predicated region
        $region21: #{_tree_lstm_pallas.1} parent=11 // pred_check
          %p213 = pneg %p90
        $region22: #{_tree_lstm_pallas.1} parent=11 // pred_check_branch
          %215 = sbr.rel (%p213) target = $region24
        $region23: #{_tree_lstm_pallas.1} parent=11 // pred_region
          _
        $region24: #{_tree_lstm_pallas.1} parent=11 // pred_fallthru
          _
        // Predicated region
        $region25: #{_tree_lstm_pallas.1} parent=11 // pred_check
          %p216 = pneg %p111
        $region26: #{_tree_lstm_pallas.1} parent=11 // pred_check_branch
          %218 = sbr.rel (%p216) target = $region28
        $region27: #{_tree_lstm_pallas.1} parent=11 // pred_region
          %s220 = ssub.s32 512, 512
          %221 = vsyncadd [#allocation9], %s220
          %s222 = sshll.u32 [#allocation10], 4
          %s223 = int_to_ptr.vmem [resolvable:$true] %s222
          %228 = dma.hbm_to_vmem [thread:$0]  %s5, 512, %s223, [#allocation9], 128, 128, 8
        $region28: #{_tree_lstm_pallas.1} parent=11 // pred_fallthru
          _
        // Predicated region
        $region29: #{_tree_lstm_pallas.1} parent=11 // pred_check
          %p229 = pneg %p132
        $region30: #{_tree_lstm_pallas.1} parent=11 // pred_check_branch
          %231 = sbr.rel (%p229) target = $region32
        $region31: #{_tree_lstm_pallas.1} parent=11 // pred_region
          _
        $region32: #{_tree_lstm_pallas.1} parent=11 // pred_fallthru
          _
      $region12: #{_tree_lstm_pallas.1} parent=5 // pred_fallthru
        _
      %p232 = scmp.lt.s32.totalorder %s27, 5
      // Predicated region
      $region33: #{_tree_lstm_pallas.1} parent=5 // pred_check
        %p233 = pneg %p232
      $region34: #{_tree_lstm_pallas.1} parent=5 // pred_check_branch
        %235 = sbr.rel (%p233) target = $region36
      $region35: #{_tree_lstm_pallas.1} parent=5 // pred_region
        _
      $region36: #{_tree_lstm_pallas.1} parent=5 // pred_fallthru
        _
      %p236 = scmp.le.s32.totalorder 1, %s27
      %p237 = scmp.lt.s32.totalorder %s27, 6
      %p238 = pnand %p236, %p237
      %p239 = pneg %p238
      // Predicated region
      $region37: #{_tree_lstm_pallas.1} parent=5 // pred_check
        _
      $region38: #{_tree_lstm_pallas.1} parent=5 // pred_check_branch
        %241 = sbr.rel (%p238) target = $region40
      $region39: #{_tree_lstm_pallas.1} parent=5 // pred_region
        %s242 = ssub.s32 %s27, 1
        // Predicated region
        $region41: #{_tree_lstm_pallas.1} parent=39 // pred_check
          %p243 = pneg %p48
        $region42: #{_tree_lstm_pallas.1} parent=39 // pred_check_branch
          %245 = sbr.rel (%p243) target = $region44
        $region43: #{_tree_lstm_pallas.1} parent=39 // pred_region
          %246 = dma.done [#allocation6], 128
        $region44: #{_tree_lstm_pallas.1} parent=39 // pred_fallthru
          _
        // Predicated region
        $region45: #{_tree_lstm_pallas.1} parent=39 // pred_check
          %p247 = pneg %p69
        $region46: #{_tree_lstm_pallas.1} parent=39 // pred_check_branch
          %249 = sbr.rel (%p247) target = $region48
        $region47: #{_tree_lstm_pallas.1} parent=39 // pred_region
          %250 = dma.done [#allocation9], 512
        $region48: #{_tree_lstm_pallas.1} parent=39 // pred_fallthru
          _
        // Predicated region
        $region49: #{_tree_lstm_pallas.1} parent=39 // pred_check
          %p251 = pneg %p111
        $region50: #{_tree_lstm_pallas.1} parent=39 // pred_check_branch
          %253 = sbr.rel (%p251) target = $region52
        $region51: #{_tree_lstm_pallas.1} parent=39 // pred_region
          %254 = dma.done [#allocation9], 512
        $region52: #{_tree_lstm_pallas.1} parent=39 // pred_fallthru
          _
        %p255 = pneg %p48
        %p256 = pneg %p45
        %p257 = pneg %p69
        %p258 = pneg %p66
        %p259 = pneg %p90
        %p260 = pneg %p87
        %p261 = pneg %p111
        %p262 = pneg %p108
        %p263 = pneg %p132
        %p264 = pneg %p129
        %p265 = pneg %p153
        %p266 = pneg %p150
        %p267 = pneg %p174
        %p268 = pneg %p171
        %p269 = scmp.eq.s32.totalorder %s32, 0
        // Predicated region
        $region53: #{_tree_lstm_pallas.1} parent=39 // pred_check
          %p270 = pneg %p269
        $region54: #{_tree_lstm_pallas.1} parent=39 // pred_check_branch
          %272 = sbr.rel (%p270) target = $region56
        $region55: #{_tree_lstm_pallas.1} parent=39 // pred_region
          %vm273 = vcmask 253952
          %274 = vst.msk [vmem:[#allocation11] sm:$0x1] %vm273, 0.0
          %275 = vst.msk [vmem:[#allocation12] sm:$0x1] %vm273, 0.0
        $region56: #{_tree_lstm_pallas.1} parent=39 // pred_fallthru
          _
        %s276 = sld [smem:[#allocation3 + %s32]]
        %s277 = scalar_lea.vmem [#allocation5], %s276
        %v278 = vld [vmem:[%s277] sm:$0x1]
        %s279 = smul.u32 %s32, 4
        %s280 = sld [smem:[#allocation4 + %s279]]
        %s281 = scalar_lea.vmem [#allocation12], %s280
        %v282 = vld [vmem:[%s281] sm:$0x1]
        %s283 = scalar_lea.vmem [#allocation11], %s280
        %v284 = vld [vmem:[%s283] sm:$0x1]
        %s285 = sadd.s32 %s279, 1
        %s286 = sld [smem:[#allocation4 + %s285]]
        %s287 = scalar_lea.vmem [#allocation12], %s286
        %v288 = vld [vmem:[%s287] sm:$0x1]
        %s289 = scalar_lea.vmem [#allocation11], %s286
        %v290 = vld [vmem:[%s289] sm:$0x1]
        %s291 = sadd.s32 %s279, 2
        %s292 = sld [smem:[#allocation4 + %s291]]
        %s293 = scalar_lea.vmem [#allocation12], %s292
        %v294 = vld [vmem:[%s293] sm:$0x1]
        %s295 = scalar_lea.vmem [#allocation11], %s292
        %v296 = vld [vmem:[%s295] sm:$0x1]
        %s297 = sadd.s32 %s279, 3
        %s298 = sld [smem:[#allocation4 + %s297]]
        %s299 = scalar_lea.vmem [#allocation12], %s298
        %v300 = vld [vmem:[%s299] sm:$0x1]
        %s301 = scalar_lea.vmem [#allocation11], %s298
        %v302 = vld [vmem:[%s301] sm:$0x1]
        %v304 = vrot.slane %v288, 7
        %v307 = vrot.slane %v294, 6
        %v310 = vrot.slane %v300, 5
        %vm312 = vcmask 1040384
        %v313 = vsel %vm312, %v282, %v304
        %vm314 = vcmask 1041408
        %v315 = vsel %vm314, %v313, %v307
        %vm316 = vcmask 1042432
        %v317 = vsel %vm316, %v315, %v310
        %v319 = vrot.slane %v290, 7
        %v322 = vrot.slane %v296, 6
        %v325 = vrot.slane %v302, 5
        %v327 = vsel %vm312, %v284, %v319
        %v328 = vsel %vm314, %v327, %v322
        %v329 = vsel %vm316, %v328, %v325
        %v330 = vld [vmem:[#allocation8] sm:$0xff]
        %v331 = vld [vmem:[#allocation8 + $0x8] sm:$0xff]
        %v332 = vld [vmem:[#allocation8 + $0x10] sm:$0xff]
        %v333 = vld [vmem:[#allocation8 + $0x18] sm:$0xff]
        %v334 = vld [vmem:[%s4] sm:$0x1]
        %vm335 = vcmask 261120
        %v337 = vsel %vm335, %v278, 0
        %339 = vmatprep.subr.mxu0 0.0
        %340 = vmatpush1.msra.mxu0 0.0
        %341 = vmatprep.subr.mxu0 0.0
        %342 = vmatpush1.msra.mxu0 0.0
        %343 = vmatprep.subr.mxu0 0.0
        %344 = vmatpush1.msra.mxu0 0.0
        %345 = vmatprep.subr.mxu0 0.0
        %346 = vmatpush1.msra.mxu0 0.0
        %347 = vmatprep.subr.mxu0 0.0
        %348 = vmatpush1.msra.mxu0 0.0
        %349 = vmatprep.subr.mxu0 0.0
        %350 = vmatpush1.msra.mxu0 0.0
        %351 = vmatprep.subr.mxu0 0.0
        %352 = vmatpush1.msra.mxu0 0.0
        %353 = vmatprep.subr.mxu0 0.0
        %354 = vmatpush1.msra.mxu0 0.0
        %355 = vmatprep.subr.mxu0 0.0
        %356 = vmatpush1.msra.mxu0 0.0
        %357 = vmatprep.subr.mxu0 0.0
        %358 = vmatpush1.msra.mxu0 0.0
        %359 = vmatprep.subr.mxu0 0.0
        %360 = vmatpush1.msra.mxu0 0.0
        %361 = vmatprep.subr.mxu0 0.0
        %362 = vmatpush1.msra.mxu0 0.0
        %363 = vmatprep.subr.mxu0 0.0
        %364 = vmatpush1.msra.mxu0 %v333
        %365 = vmatprep.subr.mxu0 0.0
        %366 = vmatpush1.msra.mxu0 %v332
        %367 = vmatprep.subr.mxu0 0.0
        %368 = vmatpush1.msra.mxu0 %v331
        %369 = vmatprep.subr.mxu0 0.0
        %370 = vmatpush1.msra.mxu0 %v330
        %371 = vmatprep.subr.mxu0 0.0
        %372 = vmatpush2.msra.mxu0 0.0
        %373 = vmatprep.subr.mxu0 0.0
        %374 = vmatpush2.msra.mxu0 0.0
        %375 = vmatprep.subr.mxu0 0.0
        %376 = vmatpush2.msra.mxu0 0.0
        %377 = vmatprep.subr.mxu0 0.0
        %378 = vmatpush2.msra.mxu0 0.0
        %379 = vmatprep.subr.mxu0 0.0
        %380 = vmatpush2.msra.mxu0 0.0
        %381 = vmatprep.subr.mxu0 0.0
        %382 = vmatpush2.msra.mxu0 0.0
        %383 = vmatprep.subr.mxu0 0.0
        %384 = vmatpush2.msra.mxu0 0.0
        %385 = vmatprep.subr.mxu0 0.0
        %386 = vmatpush2.msra.mxu0 0.0
        %387 = vmatprep.subr.mxu0 0.0
        %388 = vmatpush2.msra.mxu0 0.0
        %389 = vmatprep.subr.mxu0 0.0
        %390 = vmatpush2.msra.mxu0 0.0
        %391 = vmatprep.subr.mxu0 0.0
        %392 = vmatpush2.msra.mxu0 0.0
        %393 = vmatprep.subr.mxu0 0.0
        %394 = vmatpush2.msra.mxu0 0.0
        %395 = vmatprep.subr.mxu0 0.0
        %396 = vmatpush2.msra.mxu0 0.0
        %397 = vmatprep.subr.mxu0 0.0
        %398 = vmatpush2.msra.mxu0 0.0
        %399 = vmatprep.subr.mxu0 0.0
        %400 = vmatpush2.msra.mxu0 0.0
        %401 = vmatprep.subr.mxu0 0.0
        %402 = vmatpush2.msra.mxu0 0.0
        %403 = vmatprep.mubr.f32.mxu0 0.0
        %404 = vmatmul.mubr.f32.gmra.mxu0 %v337
        %v405 = vpop.f32.mrf.mxu0
        %v406 = vadd.f32 %v334, %v405
        %v407 = vpop.f32.mrf.mxu0
        %408 = vdwg.mxu0
        %v409 = vld [vmem:[#allocation10] sm:$0xff]
        %v410 = vld [vmem:[#allocation10 + $0x8] sm:$0xff]
        %v411 = vld [vmem:[#allocation10 + $0x10] sm:$0xff]
        %v412 = vld [vmem:[#allocation10 + $0x18] sm:$0xff]
        %v414 = vsel %vm335, %v317, 0
        %416 = vmatprep.subr.mxu0 0.0
        %417 = vmatpush1.msra.mxu0 0.0
        %418 = vmatprep.subr.mxu0 0.0
        %419 = vmatpush1.msra.mxu0 0.0
        %420 = vmatprep.subr.mxu0 0.0
        %421 = vmatpush1.msra.mxu0 0.0
        %422 = vmatprep.subr.mxu0 0.0
        %423 = vmatpush1.msra.mxu0 0.0
        %424 = vmatprep.subr.mxu0 0.0
        %425 = vmatpush1.msra.mxu0 0.0
        %426 = vmatprep.subr.mxu0 0.0
        %427 = vmatpush1.msra.mxu0 0.0
        %428 = vmatprep.subr.mxu0 0.0
        %429 = vmatpush1.msra.mxu0 0.0
        %430 = vmatprep.subr.mxu0 0.0
        %431 = vmatpush1.msra.mxu0 0.0
        %432 = vmatprep.subr.mxu0 0.0
        %433 = vmatpush1.msra.mxu0 0.0
        %434 = vmatprep.subr.mxu0 0.0
        %435 = vmatpush1.msra.mxu0 0.0
        %436 = vmatprep.subr.mxu0 0.0
        %437 = vmatpush1.msra.mxu0 0.0
        %438 = vmatprep.subr.mxu0 0.0
        %439 = vmatpush1.msra.mxu0 0.0
        %440 = vmatprep.subr.mxu0 0.0
        %441 = vmatpush1.msra.mxu0 %v412
        %442 = vmatprep.subr.mxu0 0.0
        %443 = vmatpush1.msra.mxu0 %v411
        %444 = vmatprep.subr.mxu0 0.0
        %445 = vmatpush1.msra.mxu0 %v410
        %446 = vmatprep.subr.mxu0 0.0
        %447 = vmatpush1.msra.mxu0 %v409
        %448 = vmatprep.subr.mxu0 0.0
        %449 = vmatpush2.msra.mxu0 0.0
        %450 = vmatprep.subr.mxu0 0.0
        %451 = vmatpush2.msra.mxu0 0.0
        %452 = vmatprep.subr.mxu0 0.0
        %453 = vmatpush2.msra.mxu0 0.0
        %454 = vmatprep.subr.mxu0 0.0
        %455 = vmatpush2.msra.mxu0 0.0
        %456 = vmatprep.subr.mxu0 0.0
        %457 = vmatpush2.msra.mxu0 0.0
        %458 = vmatprep.subr.mxu0 0.0
        %459 = vmatpush2.msra.mxu0 0.0
        %460 = vmatprep.subr.mxu0 0.0
        %461 = vmatpush2.msra.mxu0 0.0
        %462 = vmatprep.subr.mxu0 0.0
        %463 = vmatpush2.msra.mxu0 0.0
        %464 = vmatprep.subr.mxu0 0.0
        %465 = vmatpush2.msra.mxu0 0.0
        %466 = vmatprep.subr.mxu0 0.0
        %467 = vmatpush2.msra.mxu0 0.0
        %468 = vmatprep.subr.mxu0 0.0
        %469 = vmatpush2.msra.mxu0 0.0
        %470 = vmatprep.subr.mxu0 0.0
        %471 = vmatpush2.msra.mxu0 0.0
        %472 = vmatprep.subr.mxu0 0.0
        %473 = vmatpush2.msra.mxu0 0.0
        %474 = vmatprep.subr.mxu0 0.0
        %475 = vmatpush2.msra.mxu0 0.0
        %476 = vmatprep.subr.mxu0 0.0
        %477 = vmatpush2.msra.mxu0 0.0
        %478 = vmatprep.subr.mxu0 0.0
        %479 = vmatpush2.msra.mxu0 0.0
        %480 = vmatprep.mubr.f32.mxu0 0.0
        %481 = vmatmul.mubr.f32.gmra.mxu0 %v414
        %v482 = vpop.f32.mrf.mxu0
        %v483 = vadd.f32 0.0, %v482
        %v484 = vpop.f32.mrf.mxu0
        %485 = vdwg.mxu0
        %vm486 = vcmask 1043456
        %v487 = vsel %vm486, %v483, 0.0
        %v488 = vrot.slane %v487, 4
        %v489 = vadd.f32 %v487, %v488
        %v490 = vrot.slane %v489, 2
        %v491 = vadd.f32 %v489, %v490
        %v492 = vrot.slane %v491, 1
        %v493 = vadd.f32 %v491, %v492
        %v494 = vadd.f32 %v406, %v493
        %v495 = vld [vmem:[%s6] sm:$0x1]
        %v496 = vadd.f32 %v494, %v495
        %v497 = vxor.u32 %v496, 2147483648
        %v498 = vmul.f32 %v497, 1.442695
        %v499 = vpow.pop %v498
        %v500 = vadd.f32 %v499, 1.0
        %v501 = vrcp.pop %v500
        %v502 = vmul.f32 1.0, %v501
        %v503 = vtanh.pop %v496
        %v505 = vlaneseq
        %v506 = vshrl.u32 %v505, 7
        %v507 = vsub.s32 0, %v506
        %v508 = vrot.slane %v495, %v507
        %v510 = vadd.f32 %v483, %v508
        %v511 = vlaneseq
        %v512 = vshrl.u32 %v511, 7
        %v513 = vsub.s32 0, %v512
        %v514 = vrot.slane %v406, %v513
        %v515 = vadd.f32 %v510, %v514
        %v516 = vxor.u32 %v515, 2147483648
        %v517 = vmul.f32 %v516, 1.442695
        %v518 = vpow.pop %v517
        %v519 = vadd.f32 %v518, 1.0
        %v520 = vrcp.pop %v519
        %v521 = vmul.f32 1.0, %v520
        %523 = vrot.lane.b32.xlu0 %v329, 96
        %v524 = vpop.permute.xlu0 %523
        %v526 = vmul.f32 %v521, %v524
        %vm527 = vcmask 1044224
        %v528 = vsel %vm527, %v526, 0.0
        %v529 = vrot.slane %v528, 4
        %v530 = vadd.f32 %v528, %v529
        %v531 = vrot.slane %v530, 2
        %v532 = vadd.f32 %v530, %v531
        %v533 = vrot.slane %v532, 1
        %v534 = vadd.f32 %v532, %v533
        %536 = vrot.lane.b32.xlu0 %v503, 64
        %v537 = vpop.permute.xlu0 %536
        %v539 = vmul.f32 %v502, %v537
        %541 = vrot.lane.b32.xlu0 %v534, 32
        %v542 = vpop.permute.xlu0 %541
        %v544 = vadd.f32 %v539, %v542
        %v545 = vtanh.pop %v544
        %547 = vrot.lane.b32.xlu0 %v545, 32
        %v548 = vpop.permute.xlu0 %547
        %v550 = vmul.f32 %v502, %v548
        %s551 = sadd.s32 %s32, 1
        %s552 = scalar_lea.vmem [#allocation11], %s551
        %vm553 = vcmask 253952
        %554 = vst.msk [vmem:[%s552] sm:$0x1] %vm553, %v544
        %556 = vrot.lane.b32.xlu0 %v550, 96
        %v557 = vpop.permute.xlu0 %556
        %s559 = scalar_lea.vmem [#allocation12], %s551
        %560 = vst.msk [vmem:[%s559] sm:$0x1] %vm553, %v557
        // Predicated region
        $region57: #{_tree_lstm_pallas.1} parent=39 // pred_check
          %p561 = pneg %p150
        $region58: #{_tree_lstm_pallas.1} parent=39 // pred_check_branch
          %563 = sbr.rel (%p561) target = $region60
        $region59: #{_tree_lstm_pallas.1} parent=39 // pred_region
          %s565 = ssub.s32 128, 128
          %566 = vsyncadd [#allocation7], %s565
          %s568 = sshll.u32 [#allocation11], 4
          %s569 = int_to_ptr.vmem [resolvable:$true] %s568
          %571 = dma.vmem_to_hbm [thread:$0]  %s569, 128, %s7, [#allocation7]
        $region60: #{_tree_lstm_pallas.1} parent=39 // pred_fallthru
          _
        // Predicated region
        $region61: #{_tree_lstm_pallas.1} parent=39 // pred_check
          %p572 = pneg %p171
        $region62: #{_tree_lstm_pallas.1} parent=39 // pred_check_branch
          %574 = sbr.rel (%p572) target = $region64
        $region63: #{_tree_lstm_pallas.1} parent=39 // pred_region
          %s576 = ssub.s32 128, 128
          %577 = vsyncadd [#allocation13], %s576
          %s579 = sshll.u32 [#allocation12], 4
          %s580 = int_to_ptr.vmem [resolvable:$true] %s579
          %582 = dma.vmem_to_hbm [thread:$0]  %s580, 128, %s8, [#allocation13]
        $region64: #{_tree_lstm_pallas.1} parent=39 // pred_fallthru
          _
        // Predicated region
        $region65: #{_tree_lstm_pallas.1} parent=39 // pred_check
          %p583 = pneg %p150
        $region66: #{_tree_lstm_pallas.1} parent=39 // pred_check_branch
          %585 = sbr.rel (%p583) target = $region68
        $region67: #{_tree_lstm_pallas.1} parent=39 // pred_region
          %586 = dma.done [#allocation7], 128
        $region68: #{_tree_lstm_pallas.1} parent=39 // pred_fallthru
          _
        // Predicated region
        $region69: #{_tree_lstm_pallas.1} parent=39 // pred_check
          %p587 = pneg %p171
        $region70: #{_tree_lstm_pallas.1} parent=39 // pred_check_branch
          %589 = sbr.rel (%p587) target = $region72
        $region71: #{_tree_lstm_pallas.1} parent=39 // pred_region
          %590 = dma.done [#allocation13], 128
        $region72: #{_tree_lstm_pallas.1} parent=39 // pred_fallthru
          _
      $region40: #{_tree_lstm_pallas.1} parent=5 // pred_fallthru
        _
      %p591 = scmp.le.s32.totalorder 2, %s27
      // Predicated region
      $region73: #{_tree_lstm_pallas.1} parent=5 // pred_check
        %p592 = pneg %p591
      $region74: #{_tree_lstm_pallas.1} parent=5 // pred_check_branch
        %594 = sbr.rel (%p592) target = $region76
      $region75: #{_tree_lstm_pallas.1} parent=5 // pred_region
        %s595 = ssub.s32 %s27, 2
      $region76: #{_tree_lstm_pallas.1} parent=5 // pred_fallthru
        _
    $region6: #{_tree_lstm_pallas.1} parent=1 // loop_footer
      %s31 = sadd.s32 1, %s27
    $region7: #{_tree_lstm_pallas.1} parent=1 // loop_footer_branch
      %26 = sbr.rel target = $region3
    $region8: #{_tree_lstm_pallas.1} parent=1 // loop_exit
      _
    %596 = vsyncpa [#allocation6], 1
    %s597 = scalar_lea.sflag [#allocation6], 1
    %598 = vsyncpa %s597, 1
    %599 = vsyncpa [#allocation9], 1
    %600 = vsyncpa [#allocation7], 1
    %s601 = scalar_lea.sflag [#allocation7], 1
    %602 = vsyncpa %s601, 1
    %603 = vsyncpa [#allocation13], 1

</llo_original>
